<compile_context>
chip_gen: v6e
topology: v6e:2x2x1
jax: 0.10.0
libtpu: 0.0.40
codegen_flags: <defaults>
</compile_context>

<pallas_src>
import jax
import jax.numpy as jnp
from jax.experimental import pallas as pl
from jax.experimental.pallas import tpu as pltpu

TARGET_GRID_STEPS = 8     # keep >= 2 (ideally >= 8) steps so v7x's 2 TCs both work
MAX_TILE_LANES = 65536    # 1.25 MiB logical x+out per step; ~8 MiB VMEM double-buffered


def mlp_kernel(w1_ref, b1_ref, w2_ref, b2_ref, x_ref, o_ref):
    # x_ref: (2, T) VMEM, batch on lanes.  o_ref: (3, T) VMEM.
    # w1 (5,2), b1 (5,), w2 (3,5), b2 (3,) are SMEM-resident scalars (torch layout).
    x0 = x_ref[0:1, :]                                   # (1, T)
    x1 = x_ref[1:2, :]                                   # (1, T)

    # Hidden layer: Linear(2, 5) + ReLU  — 2 broadcast FMAs per neuron (VPU).
    h = []
    for j in range(5):
        hj = x0 * w1_ref[j, 0] + x1 * w1_ref[j, 1] + b1_ref[j]
        h.append(jnp.maximum(hj, 0.0))

    # Output layer: Linear(5, 3) + ReLU — 5 broadcast FMAs per neuron (VPU).
    for k in range(3):
        acc = h[0] * w2_ref[k, 0]
        for j in range(1, 5):
            acc = acc + h[j] * w2_ref[k, j]
        o_ref[k:k + 1, :] = jnp.maximum(acc + b2_ref[k], 0.0)


def _choose_tile_lanes(batch):
    """Lanes per grid step: multiple of 128, aim for >= TARGET_GRID_STEPS steps,
    capped by the VMEM budget (sized against v7x's 64 MiB physical / 32 MiB scoped)."""
    per_step = -(-batch // TARGET_GRID_STEPS)            # ceil(B / steps)
    per_step = -(-per_step // 128) * 128                 # round up to full lane tiles
    return max(128, min(MAX_TILE_LANES, per_step))


@jax.jit
def net_forward(x, params):
    """x: (B, 2) float32 -> (B, 3) float32; identical semantics to Net.forward."""
    w1, b1, w2, b2 = params                              # torch layout: (5,2) (5,) (3,5) (3,)
    B = x.shape[0]
    tile = _choose_tile_lanes(B)

    # Layout plumbing only: put batch on lanes so kernel I/O is lane-dense.
    x_t = x.astype(jnp.float32).T                        # (2, B)

    out_t = pl.pallas_call(
        mlp_kernel,
        out_shape=jax.ShapeDtypeStruct((3, B), jnp.float32),
        grid=(pl.cdiv(B, tile),),                        # ragged tail masked by Pallas
        in_specs=[
            pl.BlockSpec(memory_space=pltpu.MemorySpace.SMEM),   # w1 (5,2) scalars
            pl.BlockSpec(memory_space=pltpu.MemorySpace.SMEM),   # b1 (5,)
            pl.BlockSpec(memory_space=pltpu.MemorySpace.SMEM),   # w2 (3,5)
            pl.BlockSpec(memory_space=pltpu.MemorySpace.SMEM),   # b2 (3,)
            pl.BlockSpec((2, tile), lambda i: (0, i)),           # x tile, lane-dense
        ],
        out_specs=pl.BlockSpec((3, tile), lambda i: (0, i)),     # out tile, lane-dense
        compiler_params=pltpu.CompilerParams(
            dimension_semantics=("parallel",),           # independent batch tiles -> v7x 2 TCs
        ),
    )(
        w1.astype(jnp.float32), b1.astype(jnp.float32),
        w2.astype(jnp.float32), b2.astype(jnp.float32),
        x_t,
    )
    return out_t.T                                       # (B, 3), module's output layout


def init_params(key):
    """Deterministic init with the same shapes as the PyTorch module."""
    k1, k2, k3, k4 = jax.random.split(key, 4)
    # torch.nn.Linear default: U(-1/sqrt(fan_in), 1/sqrt(fan_in))
    lim1 = 1.0 / jnp.sqrt(2.0)
    lim2 = 1.0 / jnp.sqrt(5.0)
    w1 = jax.random.uniform(k1, (5, 2), jnp.float32, -lim1, lim1)
    b1 = jax.random.uniform(k2, (5,), jnp.float32, -lim1, lim1)
    w2 = jax.random.uniform(k3, (3, 5), jnp.float32, -lim2, lim2)
    b2 = jax.random.uniform(k4, (3,), jnp.float32, -lim2, lim2)
    return w1, b1, w2, b2


def net_forward_ref(x, params):
    """Pure-JAX reference for validation."""
    w1, b1, w2, b2 = params
    h = jnp.maximum(x @ w1.T + b1, 0.0)
    return jnp.maximum(h @ w2.T + b2, 0.0)


if __name__ == "__main__":
    key = jax.random.PRNGKey(0)
    pkey, xkey, xkey2 = jax.random.split(key, 3)
    params = init_params(pkey)

    # Small deterministic input consistent with Linear(2, ...): batch=8, 2 features.
    x = jax.random.normal(xkey, (8, 2), dtype=jnp.float32)
    y = net_forward(x, params)
    jax.block_until_ready(y)
    assert y.shape == (8, 3), y.shape
    assert jnp.allclose(y, net_forward_ref(x, params), atol=1e-5, rtol=1e-5), \
        "mismatch vs reference (small batch)"

    # Larger, non-128-multiple batch: exercises a multi-step grid (8 tiles of
    # 384 lanes) plus the masked ragged tail block.
    x_big = jax.random.normal(xkey2, (3000, 2), dtype=jnp.float32)
    y_big = net_forward(x_big, params)
    jax.block_until_ready(y_big)
    assert y_big.shape == (3000, 3), y_big.shape
    assert jnp.allclose(y_big, net_forward_ref(x_big, params), atol=1e-5, rtol=1e-5), \
        "mismatch vs reference (tiled batch, ragged tail)"

    print("KERNEL_OK")
</pallas_src>

<mosaic_0001>
module attributes {stable_mosaic.version = 11 : i64} {
  func.func @mlp_kernel(%arg0: i32, %arg1: memref<5x2xf32, #tpu.memory_space<smem>>, %arg2: memref<5xf32, #tpu.memory_space<smem>>, %arg3: memref<3x5xf32, #tpu.memory_space<smem>>, %arg4: memref<3xf32, #tpu.memory_space<smem>>, %arg5: memref<2x128xf32, #tpu.memory_space<vmem>>, %arg6: memref<3x128xf32, #tpu.memory_space<vmem>>) attributes {dimension_semantics = [#tpu.dimension_semantics<parallel>], iteration_bounds = array<i64: 1>, scalar_prefetch = 0 : i64, scratch_operands = 0 : i64, tpu.core_type = #tpu.core_type<tc>, window_params = [{transform_indices = @transform_0, window_bounds = array<i64: 5, 2>}, {transform_indices = @transform_1, window_bounds = array<i64: 5>}, {transform_indices = @transform_2, window_bounds = array<i64: 3, 5>}, {transform_indices = @transform_3, window_bounds = array<i64: 3>}, {transform_indices = @transform_4, window_bounds = array<i64: 2, 128>}, {transform_indices = @transform_5, window_bounds = array<i64: 3, 128>}]} {
    %c0 = arith.constant 0 : index
    %c0_0 = arith.constant 0 : index
    %0 = vector.load %arg5[%c0, %c0_0] : memref<2x128xf32, #tpu.memory_space<vmem>>, vector<1x128xf32>
    %c1 = arith.constant 1 : index
    %c0_1 = arith.constant 0 : index
    %1 = vector.load %arg5[%c1, %c0_1] : memref<2x128xf32, #tpu.memory_space<vmem>>, vector<1x128xf32>
    %c0_2 = arith.constant 0 : index
    %c0_3 = arith.constant 0 : index
    %2 = memref.load %arg1[%c0_2, %c0_3] : memref<5x2xf32, #tpu.memory_space<smem>>
    %3 = vector.broadcast %2 : f32 to vector<1x128xf32>
    %4 = arith.mulf %0, %3 : vector<1x128xf32>
    %c0_4 = arith.constant 0 : index
    %c1_5 = arith.constant 1 : index
    %5 = memref.load %arg1[%c0_4, %c1_5] : memref<5x2xf32, #tpu.memory_space<smem>>
    %6 = vector.broadcast %5 : f32 to vector<1x128xf32>
    %7 = arith.mulf %1, %6 : vector<1x128xf32>
    %8 = arith.addf %4, %7 : vector<1x128xf32>
    %c0_6 = arith.constant 0 : index
    %9 = memref.load %arg2[%c0_6] : memref<5xf32, #tpu.memory_space<smem>>
    %10 = vector.broadcast %9 : f32 to vector<1x128xf32>
    %11 = arith.addf %8, %10 : vector<1x128xf32>
    %cst = arith.constant 0.000000e+00 : f32
    %12 = vector.broadcast %cst : f32 to vector<1x128xf32>
    %13 = arith.maximumf %11, %12 : vector<1x128xf32>
    %c1_7 = arith.constant 1 : index
    %c0_8 = arith.constant 0 : index
    %14 = memref.load %arg1[%c1_7, %c0_8] : memref<5x2xf32, #tpu.memory_space<smem>>
    %15 = vector.broadcast %14 : f32 to vector<1x128xf32>
    %16 = arith.mulf %0, %15 : vector<1x128xf32>
    %c1_9 = arith.constant 1 : index
    %c1_10 = arith.constant 1 : index
    %17 = memref.load %arg1[%c1_9, %c1_10] : memref<5x2xf32, #tpu.memory_space<smem>>
    %18 = vector.broadcast %17 : f32 to vector<1x128xf32>
    %19 = arith.mulf %1, %18 : vector<1x128xf32>
    %20 = arith.addf %16, %19 : vector<1x128xf32>
    %c1_11 = arith.constant 1 : index
    %21 = memref.load %arg2[%c1_11] : memref<5xf32, #tpu.memory_space<smem>>
    %22 = vector.broadcast %21 : f32 to vector<1x128xf32>
    %23 = arith.addf %20, %22 : vector<1x128xf32>
    %cst_12 = arith.constant 0.000000e+00 : f32
    %24 = vector.broadcast %cst_12 : f32 to vector<1x128xf32>
    %25 = arith.maximumf %23, %24 : vector<1x128xf32>
    %c2 = arith.constant 2 : index
    %c0_13 = arith.constant 0 : index
    %26 = memref.load %arg1[%c2, %c0_13] : memref<5x2xf32, #tpu.memory_space<smem>>
    %27 = vector.broadcast %26 : f32 to vector<1x128xf32>
    %28 = arith.mulf %0, %27 : vector<1x128xf32>
    %c2_14 = arith.constant 2 : index
    %c1_15 = arith.constant 1 : index
    %29 = memref.load %arg1[%c2_14, %c1_15] : memref<5x2xf32, #tpu.memory_space<smem>>
    %30 = vector.broadcast %29 : f32 to vector<1x128xf32>
    %31 = arith.mulf %1, %30 : vector<1x128xf32>
    %32 = arith.addf %28, %31 : vector<1x128xf32>
    %c2_16 = arith.constant 2 : index
    %33 = memref.load %arg2[%c2_16] : memref<5xf32, #tpu.memory_space<smem>>
    %34 = vector.broadcast %33 : f32 to vector<1x128xf32>
    %35 = arith.addf %32, %34 : vector<1x128xf32>
    %cst_17 = arith.constant 0.000000e+00 : f32
    %36 = vector.broadcast %cst_17 : f32 to vector<1x128xf32>
    %37 = arith.maximumf %35, %36 : vector<1x128xf32>
    %c3 = arith.constant 3 : index
    %c0_18 = arith.constant 0 : index
    %38 = memref.load %arg1[%c3, %c0_18] : memref<5x2xf32, #tpu.memory_space<smem>>
    %39 = vector.broadcast %38 : f32 to vector<1x128xf32>
    %40 = arith.mulf %0, %39 : vector<1x128xf32>
    %c3_19 = arith.constant 3 : index
    %c1_20 = arith.constant 1 : index
    %41 = memref.load %arg1[%c3_19, %c1_20] : memref<5x2xf32, #tpu.memory_space<smem>>
    %42 = vector.broadcast %41 : f32 to vector<1x128xf32>
    %43 = arith.mulf %1, %42 : vector<1x128xf32>
    %44 = arith.addf %40, %43 : vector<1x128xf32>
    %c3_21 = arith.constant 3 : index
    %45 = memref.load %arg2[%c3_21] : memref<5xf32, #tpu.memory_space<smem>>
    %46 = vector.broadcast %45 : f32 to vector<1x128xf32>
    %47 = arith.addf %44, %46 : vector<1x128xf32>
    %cst_22 = arith.constant 0.000000e+00 : f32
    %48 = vector.broadcast %cst_22 : f32 to vector<1x128xf32>
    %49 = arith.maximumf %47, %48 : vector<1x128xf32>
    %c4 = arith.constant 4 : index
    %c0_23 = arith.constant 0 : index
    %50 = memref.load %arg1[%c4, %c0_23] : memref<5x2xf32, #tpu.memory_space<smem>>
    %51 = vector.broadcast %50 : f32 to vector<1x128xf32>
    %52 = arith.mulf %0, %51 : vector<1x128xf32>
    %c4_24 = arith.constant 4 : index
    %c1_25 = arith.constant 1 : index
    %53 = memref.load %arg1[%c4_24, %c1_25] : memref<5x2xf32, #tpu.memory_space<smem>>
    %54 = vector.broadcast %53 : f32 to vector<1x128xf32>
    %55 = arith.mulf %1, %54 : vector<1x128xf32>
    %56 = arith.addf %52, %55 : vector<1x128xf32>
    %c4_26 = arith.constant 4 : index
    %57 = memref.load %arg2[%c4_26] : memref<5xf32, #tpu.memory_space<smem>>
    %58 = vector.broadcast %57 : f32 to vector<1x128xf32>
    %59 = arith.addf %56, %58 : vector<1x128xf32>
    %cst_27 = arith.constant 0.000000e+00 : f32
    %60 = vector.broadcast %cst_27 : f32 to vector<1x128xf32>
    %61 = arith.maximumf %59, %60 : vector<1x128xf32>
    %c0_28 = arith.constant 0 : index
    %c0_29 = arith.constant 0 : index
    %62 = memref.load %arg3[%c0_28, %c0_29] : memref<3x5xf32, #tpu.memory_space<smem>>
    %63 = vector.broadcast %62 : f32 to vector<1x128xf32>
    %64 = arith.mulf %13, %63 : vector<1x128xf32>
    %c0_30 = arith.constant 0 : index
    %c1_31 = arith.constant 1 : index
    %65 = memref.load %arg3[%c0_30, %c1_31] : memref<3x5xf32, #tpu.memory_space<smem>>
    %66 = vector.broadcast %65 : f32 to vector<1x128xf32>
    %67 = arith.mulf %25, %66 : vector<1x128xf32>
    %68 = arith.addf %64, %67 : vector<1x128xf32>
    %c0_32 = arith.constant 0 : index
    %c2_33 = arith.constant 2 : index
    %69 = memref.load %arg3[%c0_32, %c2_33] : memref<3x5xf32, #tpu.memory_space<smem>>
    %70 = vector.broadcast %69 : f32 to vector<1x128xf32>
    %71 = arith.mulf %37, %70 : vector<1x128xf32>
    %72 = arith.addf %68, %71 : vector<1x128xf32>
    %c0_34 = arith.constant 0 : index
    %c3_35 = arith.constant 3 : index
    %73 = memref.load %arg3[%c0_34, %c3_35] : memref<3x5xf32, #tpu.memory_space<smem>>
    %74 = vector.broadcast %73 : f32 to vector<1x128xf32>
    %75 = arith.mulf %49, %74 : vector<1x128xf32>
    %76 = arith.addf %72, %75 : vector<1x128xf32>
    %c0_36 = arith.constant 0 : index
    %c4_37 = arith.constant 4 : index
    %77 = memref.load %arg3[%c0_36, %c4_37] : memref<3x5xf32, #tpu.memory_space<smem>>
    %78 = vector.broadcast %77 : f32 to vector<1x128xf32>
    %79 = arith.mulf %61, %78 : vector<1x128xf32>
    %80 = arith.addf %76, %79 : vector<1x128xf32>
    %c0_38 = arith.constant 0 : index
    %81 = memref.load %arg4[%c0_38] : memref<3xf32, #tpu.memory_space<smem>>
    %82 = vector.broadcast %81 : f32 to vector<1x128xf32>
    %83 = arith.addf %80, %82 : vector<1x128xf32>
    %cst_39 = arith.constant 0.000000e+00 : f32
    %84 = vector.broadcast %cst_39 : f32 to vector<1x128xf32>
    %85 = arith.maximumf %83, %84 : vector<1x128xf32>
    %c0_40 = arith.constant 0 : index
    %c0_41 = arith.constant 0 : index
    %86 = vector.load %arg6[%c0_40, %c0_41] : memref<3x128xf32, #tpu.memory_space<vmem>>, vector<1x128xf32>
    tpu.vector_store %arg6[%c0_40, %c0_41], %85 {strides = array<i32>} : memref<3x128xf32, #tpu.memory_space<vmem>>, vector<1x128xf32>,
    %c1_42 = arith.constant 1 : index
    %c0_43 = arith.constant 0 : index
    %87 = memref.load %arg3[%c1_42, %c0_43] : memref<3x5xf32, #tpu.memory_space<smem>>
    %88 = vector.broadcast %87 : f32 to vector<1x128xf32>
    %89 = arith.mulf %13, %88 : vector<1x128xf32>
    %c1_44 = arith.constant 1 : index
    %c1_45 = arith.constant 1 : index
    %90 = memref.load %arg3[%c1_44, %c1_45] : memref<3x5xf32, #tpu.memory_space<smem>>
    %91 = vector.broadcast %90 : f32 to vector<1x128xf32>
    %92 = arith.mulf %25, %91 : vector<1x128xf32>
    %93 = arith.addf %89, %92 : vector<1x128xf32>
    %c1_46 = arith.constant 1 : index
    %c2_47 = arith.constant 2 : index
    %94 = memref.load %arg3[%c1_46, %c2_47] : memref<3x5xf32, #tpu.memory_space<smem>>
    %95 = vector.broadcast %94 : f32 to vector<1x128xf32>
    %96 = arith.mulf %37, %95 : vector<1x128xf32>
    %97 = arith.addf %93, %96 : vector<1x128xf32>
    %c1_48 = arith.constant 1 : index
    %c3_49 = arith.constant 3 : index
    %98 = memref.load %arg3[%c1_48, %c3_49] : memref<3x5xf32, #tpu.memory_space<smem>>
    %99 = vector.broadcast %98 : f32 to vector<1x128xf32>
    %100 = arith.mulf %49, %99 : vector<1x128xf32>
    %101 = arith.addf %97, %100 : vector<1x128xf32>
    %c1_50 = arith.constant 1 : index
    %c4_51 = arith.constant 4 : index
    %102 = memref.load %arg3[%c1_50, %c4_51] : memref<3x5xf32, #tpu.memory_space<smem>>
    %103 = vector.broadcast %102 : f32 to vector<1x128xf32>
    %104 = arith.mulf %61, %103 : vector<1x128xf32>
    %105 = arith.addf %101, %104 : vector<1x128xf32>
    %c1_52 = arith.constant 1 : index
    %106 = memref.load %arg4[%c1_52] : memref<3xf32, #tpu.memory_space<smem>>
    %107 = vector.broadcast %106 : f32 to vector<1x128xf32>
    %108 = arith.addf %105, %107 : vector<1x128xf32>
    %cst_53 = arith.constant 0.000000e+00 : f32
    %109 = vector.broadcast %cst_53 : f32 to vector<1x128xf32>
    %110 = arith.maximumf %108, %109 : vector<1x128xf32>
    %c1_54 = arith.constant 1 : index
    %c0_55 = arith.constant 0 : index
    %111 = vector.load %arg6[%c1_54, %c0_55] : memref<3x128xf32, #tpu.memory_space<vmem>>, vector<1x128xf32>
    tpu.vector_store %arg6[%c1_54, %c0_55], %110 {strides = array<i32>} : memref<3x128xf32, #tpu.memory_space<vmem>>, vector<1x128xf32>,
    %c2_56 = arith.constant 2 : index
    %c0_57 = arith.constant 0 : index
    %112 = memref.load %arg3[%c2_56, %c0_57] : memref<3x5xf32, #tpu.memory_space<smem>>
    %113 = vector.broadcast %112 : f32 to vector<1x128xf32>
    %114 = arith.mulf %13, %113 : vector<1x128xf32>
    %c2_58 = arith.constant 2 : index
    %c1_59 = arith.constant 1 : index
    %115 = memref.load %arg3[%c2_58, %c1_59] : memref<3x5xf32, #tpu.memory_space<smem>>
    %116 = vector.broadcast %115 : f32 to vector<1x128xf32>
    %117 = arith.mulf %25, %116 : vector<1x128xf32>
    %118 = arith.addf %114, %117 : vector<1x128xf32>
    %c2_60 = arith.constant 2 : index
    %c2_61 = arith.constant 2 : index
    %119 = memref.load %arg3[%c2_60, %c2_61] : memref<3x5xf32, #tpu.memory_space<smem>>
    %120 = vector.broadcast %119 : f32 to vector<1x128xf32>
    %121 = arith.mulf %37, %120 : vector<1x128xf32>
    %122 = arith.addf %118, %121 : vector<1x128xf32>
    %c2_62 = arith.constant 2 : index
    %c3_63 = arith.constant 3 : index
    %123 = memref.load %arg3[%c2_62, %c3_63] : memref<3x5xf32, #tpu.memory_space<smem>>
    %124 = vector.broadcast %123 : f32 to vector<1x128xf32>
    %125 = arith.mulf %49, %124 : vector<1x128xf32>
    %126 = arith.addf %122, %125 : vector<1x128xf32>
    %c2_64 = arith.constant 2 : index
    %c4_65 = arith.constant 4 : index
    %127 = memref.load %arg3[%c2_64, %c4_65] : memref<3x5xf32, #tpu.memory_space<smem>>
    %128 = vector.broadcast %127 : f32 to vector<1x128xf32>
    %129 = arith.mulf %61, %128 : vector<1x128xf32>
    %130 = arith.addf %126, %129 : vector<1x128xf32>
    %c2_66 = arith.constant 2 : index
    %131 = memref.load %arg4[%c2_66] : memref<3xf32, #tpu.memory_space<smem>>
    %132 = vector.broadcast %131 : f32 to vector<1x128xf32>
    %133 = arith.addf %130, %132 : vector<1x128xf32>
    %cst_67 = arith.constant 0.000000e+00 : f32
    %134 = vector.broadcast %cst_67 : f32 to vector<1x128xf32>
    %135 = arith.maximumf %133, %134 : vector<1x128xf32>
    %c2_68 = arith.constant 2 : index
    %c0_69 = arith.constant 0 : index
    %136 = vector.load %arg6[%c2_68, %c0_69] : memref<3x128xf32, #tpu.memory_space<vmem>>, vector<1x128xf32>
    tpu.vector_store %arg6[%c2_68, %c0_69], %135 {strides = array<i32>} : memref<3x128xf32, #tpu.memory_space<vmem>>, vector<1x128xf32>,
    return
  }
  func.func @transform_0(%arg0: i32) -> (i32, i32) {
    %c0_i32 = arith.constant 0 : i32
    %c0_i32_0 = arith.constant 0 : i32
    %c0_i32_1 = arith.constant 0 : i32
    return %c0_i32, %c0_i32_0 : i32, i32
  }
  func.func @transform_1(%arg0: i32) -> i32 {
    %c0_i32 = arith.constant 0 : i32
    %c0_i32_0 = arith.constant 0 : i32
    return %c0_i32 : i32
  }
  func.func @transform_2(%arg0: i32) -> (i32, i32) {
    %c0_i32 = arith.constant 0 : i32
    %c0_i32_0 = arith.constant 0 : i32
    %c0_i32_1 = arith.constant 0 : i32
    return %c0_i32, %c0_i32_0 : i32, i32
  }
  func.func @transform_3(%arg0: i32) -> i32 {
    %c0_i32 = arith.constant 0 : i32
    %c0_i32_0 = arith.constant 0 : i32
    return %c0_i32 : i32
  }
  func.func @transform_4(%arg0: i32) -> (i32, i32) {
    %c0_i32 = arith.constant 0 : i32
    %c0_i32_0 = arith.constant 0 : i32
    return %c0_i32, %arg0 : i32, i32
  }
  func.func @transform_5(%arg0: i32) -> (i32, i32) {
    %c0_i32 = arith.constant 0 : i32
    %c0_i32_0 = arith.constant 0 : i32
    return %c0_i32, %arg0 : i32, i32
  }
}

</mosaic_0001>

<llo_original>
// kernel: net_forward.1
$region0: #{net_forward.1}
  #allocation0 [shape = 'u32[]', space=smem, size = 0x4, offset = 0x4, fixed_abs, tag = 'smem constant byte address 0x4 - core index']
  #allocation1 [shape = 'u32[144,128]{1,0:T(1,128)}', space=vmem, size = 0x12000, scoped, tag = 'internal scratch']
  %s0 = inlined_call_operand.vmem [shape: f32[5,2], index: 0, kind: input, shape index: {}]
  %s1 = inlined_call_operand.vmem [shape: f32[5], index: 1, kind: input, shape index: {}]
  %s2 = inlined_call_operand.vmem [shape: f32[3,5], index: 2, kind: input, shape index: {}]
  %s3 = inlined_call_operand.vmem [shape: f32[3], index: 3, kind: input, shape index: {}]
  %s4 = inlined_call_operand.vmem [shape: f32[2,8], index: 4, kind: input, shape index: {}]
  %s5 = inlined_call_operand.hbm [shape: f32[3,8], index: 5, kind: output, shape index: {}]
  %s6 = sld [smem:[#allocation0]]
  $region46: #{net_forward.1} parent=0
    _
  %s8 = ssub.s32 1, %s6
  %s9 = scalar_select 0, %s8, %s6
  $region1: #{net_forward.1} parent=0
    #allocation2 [shape = 'u8[4096]{0}', space=smem, size = 0x1000, scoped, tag = 'input window, operand 0, single buffered']
    #allocation3 [shape = 's32[1]{0}', space=sflag, size = 0x4, scoped, tag = 'scoped memory for net_forward.1']
    #allocation4 [shape = 's32[1]{0}', space=sflag, size = 0x4, scoped, tag = 'scoped memory for net_forward.1']
    #allocation5 [shape = 'u8[512]{0}', space=smem, size = 0x200, scoped, tag = 'input window, operand 1, single buffered']
    #allocation6 [shape = 's32[1]{0}', space=sflag, size = 0x4, scoped, tag = 'scoped memory for net_forward.1']
    #allocation7 [shape = 'u8[2048]{0}', space=smem, size = 0x800, scoped, tag = 'input window, operand 2, single buffered']
    #allocation8 [shape = 'u8[512]{0}', space=smem, size = 0x200, scoped, tag = 'input window, operand 3, single buffered']
    #allocation9 [shape = 's32[1]{0}', space=sflag, size = 0x4, scoped, tag = 'scoped memory for net_forward.1']
    #allocation10 [shape = 'u8[2048]{0}', space=vmem, size = 0x800, scoped, tag = 'output window, operand 0, single buffered']
    %10 = vsyncpa [#allocation4], 0
    %11 = vsyncpa [#allocation6], 0
    %12 = vsyncpa [#allocation9], 0
    %13 = vsyncpa [#allocation3], 0
    // Predicated region
    $region2: #{net_forward.1} parent=1 // pred_check
      _
    $region3: #{net_forward.1} parent=1 // pred_check_branch
      %15 = sbr.rel (0) target = $region5
    $region4: #{net_forward.1} parent=1 // pred_region
      %s17 = ssub.s32 128, 128
      %18 = vsyncadd [#allocation4], %s17
      %s20 = sshll.u32 %s0, 4
      %s21 = int_to_ptr.vmem [resolvable:$true] %s20
      %23 = dma.vmem_to_smem %s21, 128, [#allocation2], [#allocation4]
    $region5: #{net_forward.1} parent=1 // pred_fallthru
      _
    // Predicated region
    $region6: #{net_forward.1} parent=1 // pred_check
      _
    $region7: #{net_forward.1} parent=1 // pred_check_branch
      %25 = sbr.rel (0) target = $region9
    $region8: #{net_forward.1} parent=1 // pred_region
      %s27 = ssub.s32 16, 16
      %28 = vsyncadd [#allocation6], %s27
      %s30 = sshll.u32 %s1, 4
      %s31 = int_to_ptr.vmem [resolvable:$true] %s30
      %33 = dma.vmem_to_smem %s31, 16, [#allocation5], [#allocation6]
    $region9: #{net_forward.1} parent=1 // pred_fallthru
      _
    // Predicated region
    $region10: #{net_forward.1} parent=1 // pred_check
      _
    $region11: #{net_forward.1} parent=1 // pred_check_branch
      %35 = sbr.rel (0) target = $region13
    $region12: #{net_forward.1} parent=1 // pred_region
      %s37 = ssub.s32 64, 64
      %38 = vsyncadd [#allocation6], %s37
      %s40 = sshll.u32 %s2, 4
      %s41 = int_to_ptr.vmem [resolvable:$true] %s40
      %43 = dma.vmem_to_smem %s41, 64, [#allocation7], [#allocation6]
    $region13: #{net_forward.1} parent=1 // pred_fallthru
      _
    // Predicated region
    $region14: #{net_forward.1} parent=1 // pred_check
      _
    $region15: #{net_forward.1} parent=1 // pred_check_branch
      %45 = sbr.rel (0) target = $region17
    $region16: #{net_forward.1} parent=1 // pred_region
      %s47 = ssub.s32 16, 16
      %48 = vsyncadd [#allocation9], %s47
      %s50 = sshll.u32 %s3, 4
      %s51 = int_to_ptr.vmem [resolvable:$true] %s50
      %53 = dma.vmem_to_smem %s51, 16, [#allocation8], [#allocation9]
    $region17: #{net_forward.1} parent=1 // pred_fallthru
      _
    // Predicated region
    $region18: #{net_forward.1} parent=1 // pred_check
      _
    $region19: #{net_forward.1} parent=1 // pred_check_branch
      %55 = sbr.rel (0) target = $region21
    $region20: #{net_forward.1} parent=1 // pred_region
      _
    $region21: #{net_forward.1} parent=1 // pred_fallthru
      _
    // Predicated region
    $region22: #{net_forward.1} parent=1 // pred_check
      _
    $region23: #{net_forward.1} parent=1 // pred_check_branch
      %57 = sbr.rel (0) target = $region25
    $region24: #{net_forward.1} parent=1 // pred_region
      %58 = dma.done [#allocation4], 128
    $region25: #{net_forward.1} parent=1 // pred_fallthru
      _
    // Predicated region
    $region26: #{net_forward.1} parent=1 // pred_check
      _
    $region27: #{net_forward.1} parent=1 // pred_check_branch
      %60 = sbr.rel (0) target = $region29
    $region28: #{net_forward.1} parent=1 // pred_region
      %61 = dma.done [#allocation6], 16
    $region29: #{net_forward.1} parent=1 // pred_fallthru
      _
    // Predicated region
    $region30: #{net_forward.1} parent=1 // pred_check
      _
    $region31: #{net_forward.1} parent=1 // pred_check_branch
      %63 = sbr.rel (0) target = $region33
    $region32: #{net_forward.1} parent=1 // pred_region
      %64 = dma.done [#allocation6], 64
    $region33: #{net_forward.1} parent=1 // pred_fallthru
      _
    // Predicated region
    $region34: #{net_forward.1} parent=1 // pred_check
      _
    $region35: #{net_forward.1} parent=1 // pred_check_branch
      %66 = sbr.rel (0) target = $region37
    $region36: #{net_forward.1} parent=1 // pred_region
      %67 = dma.done [#allocation9], 16
    $region37: #{net_forward.1} parent=1 // pred_fallthru
      _
    %68 = sfence
    %v69 = vld [vmem:[%s4] sm:$0x1]
    %v70 = vld [vmem:[%s4 + $0x1] sm:$0x1]
    %s71 = sld [smem:[#allocation2]]
    %v72 = vstv %s71
    %v73 = vmul.f32 %v69, %v72
    %s74 = sld [smem:[#allocation2 + $0x1]]
    %v75 = vstv %s74
    %v76 = vmul.f32 %v70, %v75
    %v77 = vadd.f32 %v73, %v76
    %s78 = sld [smem:[#allocation5]]
    %v79 = vstv %s78
    %v80 = vadd.f32 %v77, %v79
    %v81 = vmax.f32 %v80, 0.0
    %s82 = sld [smem:[#allocation2 + $0x80]]
    %v83 = vstv %s82
    %v84 = vmul.f32 %v69, %v83
    %s85 = sld [smem:[#allocation2 + $0x81]]
    %v86 = vstv %s85
    %v87 = vmul.f32 %v70, %v86
    %v88 = vadd.f32 %v84, %v87
    %s89 = sld [smem:[#allocation5 + $0x1]]
    %v90 = vstv %s89
    %v91 = vadd.f32 %v88, %v90
    %v92 = vmax.f32 %v91, 0.0
    %s93 = sld [smem:[#allocation2 + $0x100]]
    %v94 = vstv %s93
    %v95 = vmul.f32 %v69, %v94
    %s96 = sld [smem:[#allocation2 + $0x101]]
    %v97 = vstv %s96
    %v98 = vmul.f32 %v70, %v97
    %v99 = vadd.f32 %v95, %v98
    %s100 = sld [smem:[#allocation5 + $0x2]]
    %v101 = vstv %s100
    %v102 = vadd.f32 %v99, %v101
    %v103 = vmax.f32 %v102, 0.0
    %s104 = sld [smem:[#allocation2 + $0x180]]
    %v105 = vstv %s104
    %v106 = vmul.f32 %v69, %v105
    %s107 = sld [smem:[#allocation2 + $0x181]]
    %v108 = vstv %s107
    %v109 = vmul.f32 %v70, %v108
    %v110 = vadd.f32 %v106, %v109
    %s111 = sld [smem:[#allocation5 + $0x3]]
    %v112 = vstv %s111
    %v113 = vadd.f32 %v110, %v112
    %v114 = vmax.f32 %v113, 0.0
    %s115 = sld [smem:[#allocation2 + $0x200]]
    %v116 = vstv %s115
    %v117 = vmul.f32 %v69, %v116
    %s118 = sld [smem:[#allocation2 + $0x201]]
    %v119 = vstv %s118
    %v120 = vmul.f32 %v70, %v119
    %v121 = vadd.f32 %v117, %v120
    %s122 = sld [smem:[#allocation5 + $0x4]]
    %v123 = vstv %s122
    %v124 = vadd.f32 %v121, %v123
    %v125 = vmax.f32 %v124, 0.0
    %s126 = sld [smem:[#allocation7]]
    %v127 = vstv %s126
    %v128 = vmul.f32 %v81, %v127
    %s129 = sld [smem:[#allocation7 + $0x1]]
    %v130 = vstv %s129
    %v131 = vmul.f32 %v92, %v130
    %v132 = vadd.f32 %v128, %v131
    %s133 = sld [smem:[#allocation7 + $0x2]]
    %v134 = vstv %s133
    %v135 = vmul.f32 %v103, %v134
    %v136 = vadd.f32 %v132, %v135
    %s137 = sld [smem:[#allocation7 + $0x3]]
    %v138 = vstv %s137
    %v139 = vmul.f32 %v114, %v138
    %v140 = vadd.f32 %v136, %v139
    %s141 = sld [smem:[#allocation7 + $0x4]]
    %v142 = vstv %s141
    %v143 = vmul.f32 %v125, %v142
    %v144 = vadd.f32 %v140, %v143
    %s145 = sld [smem:[#allocation8]]
    %v146 = vstv %s145
    %v147 = vadd.f32 %v144, %v146
    %v148 = vmax.f32 %v147, 0.0
    %149 = vst [vmem:[#allocation10] sm:$0x1] %v148
    %s150 = sld [smem:[#allocation7 + $0x80]]
    %v151 = vstv %s150
    %v152 = vmul.f32 %v81, %v151
    %s153 = sld [smem:[#allocation7 + $0x81]]
    %v154 = vstv %s153
    %v155 = vmul.f32 %v92, %v154
    %v156 = vadd.f32 %v152, %v155
    %s157 = sld [smem:[#allocation7 + $0x82]]
    %v158 = vstv %s157
    %v159 = vmul.f32 %v103, %v158
    %v160 = vadd.f32 %v156, %v159
    %s161 = sld [smem:[#allocation7 + $0x83]]
    %v162 = vstv %s161
    %v163 = vmul.f32 %v114, %v162
    %v164 = vadd.f32 %v160, %v163
    %s165 = sld [smem:[#allocation7 + $0x84]]
    %v166 = vstv %s165
    %v167 = vmul.f32 %v125, %v166
    %v168 = vadd.f32 %v164, %v167
    %s169 = sld [smem:[#allocation8 + $0x1]]
    %v170 = vstv %s169
    %v171 = vadd.f32 %v168, %v170
    %v172 = vmax.f32 %v171, 0.0
    %173 = vst [vmem:[#allocation10 + $0x1] sm:$0x1] %v172
    %s174 = sld [smem:[#allocation7 + $0x100]]
    %v175 = vstv %s174
    %v176 = vmul.f32 %v81, %v175
    %s177 = sld [smem:[#allocation7 + $0x101]]
    %v178 = vstv %s177
    %v179 = vmul.f32 %v92, %v178
    %v180 = vadd.f32 %v176, %v179
    %s181 = sld [smem:[#allocation7 + $0x102]]
    %v182 = vstv %s181
    %v183 = vmul.f32 %v103, %v182
    %v184 = vadd.f32 %v180, %v183
    %s185 = sld [smem:[#allocation7 + $0x103]]
    %v186 = vstv %s185
    %v187 = vmul.f32 %v114, %v186
    %v188 = vadd.f32 %v184, %v187
    %s189 = sld [smem:[#allocation7 + $0x104]]
    %v190 = vstv %s189
    %v191 = vmul.f32 %v125, %v190
    %v192 = vadd.f32 %v188, %v191
    %s193 = sld [smem:[#allocation8 + $0x2]]
    %v194 = vstv %s193
    %v195 = vadd.f32 %v192, %v194
    %v196 = vmax.f32 %v195, 0.0
    %197 = vst [vmem:[#allocation10 + $0x2] sm:$0x1] %v196
    // Predicated region
    $region38: #{net_forward.1} parent=1 // pred_check
      _
    $region39: #{net_forward.1} parent=1 // pred_check_branch
      %199 = sbr.rel (0) target = $region41
    $region40: #{net_forward.1} parent=1 // pred_region
      %s201 = ssub.s32 64, 64
      %202 = vsyncadd [#allocation3], %s201
      %s204 = sshll.u32 [#allocation10], 4
      %s205 = int_to_ptr.vmem [resolvable:$true] %s204
      %207 = dma.vmem_to_hbm [thread:$0]  %s205, 64, %s5, [#allocation3]
    $region41: #{net_forward.1} parent=1 // pred_fallthru
      _
    // Predicated region
    $region42: #{net_forward.1} parent=1 // pred_check
      _
    $region43: #{net_forward.1} parent=1 // pred_check_branch
      %209 = sbr.rel (0) target = $region45
    $region44: #{net_forward.1} parent=1 // pred_region
      %210 = dma.done [#allocation3], 64
    $region45: #{net_forward.1} parent=1 // pred_fallthru
      _
    %211 = vsyncpa [#allocation3], 1
    %212 = vsyncpa [#allocation4], 1
    %213 = vsyncpa [#allocation6], 1
    %214 = vsyncpa [#allocation9], 1

</llo_original>
